<compile_context>
chip_gen: v7x
topology: tpu7x:2x2x1
jax: 0.10.0
libtpu: 0.0.40
codegen_flags: <defaults>
</compile_context>

<pallas_src>
import jax
import jax.numpy as jnp
from jax.experimental import pallas as pl
from jax.experimental.pallas import tpu as pltpu


def _round_up(v, m):
    return (v + m - 1) // m * m


def gru_cell_kernel(x_ref, hfull_ref, hcol_ref, w_ref, u_ref, b_ref, out_ref):
    """One GRU step for a (tm, tn) output column tile.

    x_ref:     (tm, Kp)        input tile
    hfull_ref: (tm, Hp)        full previous hidden state (U contraction)
    hcol_ref:  (tm, tn)        previous hidden state, this column chunk
    w_ref:     (3, Kp, tn)     input weights, gate order (r, z, n)
    u_ref:     (3, Hp, tn)     recurrent weights, gate order (r, z, n)
    b_ref:     (8, tn) f32     rows 0..3 = b_r, b_z, b_ih, b_hh (rest zero)
    out_ref:   (tm, tn)

    Six per-gate MXU dots, gates consumed in order r -> n -> z so only ~3
    (tm, tn) f32 intermediates are live at once.  Gating math is f32.
    """
    # Feed the MXU in the weight dtype (bf16 weights -> bf16 operands with
    # f32 accumulation); no-op cast for f32 weights.
    x_mx = x_ref[...].astype(w_ref.dtype)
    h_mx = hfull_ref[...].astype(u_ref.dtype)

    def gate(g):
        gx = jnp.dot(x_mx, w_ref[g], preferred_element_type=jnp.float32)
        gh = jnp.dot(h_mx, u_ref[g], preferred_element_type=jnp.float32)
        return gx, gh

    # r gate.
    gx_r, gh_r = gate(0)
    r = jax.nn.sigmoid(gx_r + b_ref[0] + gh_r)

    # candidate (n gate); b_hh sits inside r * (.) exactly like PyTorch.
    gx_n, gh_n = gate(2)
    h_tilde = jnp.tanh(gx_n + b_ref[2] + r * (gh_n + b_ref[3]))

    # z gate.
    gx_z, gh_z = gate(1)
    z = jax.nn.sigmoid(gx_z + b_ref[1] + gh_z)

    h_prev = hcol_ref[...].astype(jnp.float32)
    # (1 - z) * h_tilde + z * h_prev, with one fewer multiply.
    out_ref[...] = (h_tilde + z * (h_prev - h_tilde)).astype(out_ref.dtype)


def gru_cell(x, h_prev, params, *, weight_dtype=jnp.bfloat16, block_b=256):
    """Run one GRU cell step with a single Pallas kernel.

    x:      (B, input_size) float32
    h_prev: (B, hidden_size) float32
    params: dict of W_z, U_z, b_z, W_r, U_r, b_r, W_h, U_h, b_ih, b_hh
    """
    B, K = x.shape
    H = params["W_z"].shape[1]

    Kp = _round_up(K, 128)   # contraction width for x @ W
    Hp = _round_up(H, 128)   # per-gate lane-dense hidden width
    Bp = _round_up(B, 8)     # f32 sublane multiple

    # Batch tile: large enough to amortize per-grid-step overhead, but split
    # into >= 2 steps when possible so the "parallel" axis can shard across
    # both TensorCores on v7x.
    if Bp >= 16:
        tm = min(block_b, _round_up(Bp // 2, 8))
    else:
        tm = Bp
    Bp = _round_up(Bp, tm)

    wbytes = jnp.dtype(weight_dtype).itemsize

    # Physical VMEM per core (v5e/v6e: 128 MiB, v7x: 64 MiB).
    try:
        vmem_cap = int(pltpu.get_tpu_info().vmem_capacity_bytes)
    except Exception:
        vmem_cap = 64 * 1024 * 1024

    def _vmem_needed(tn):
        w_bufs = 1 if tn == Hp else 2  # resident+Buffered(1) vs streamed x2
        tiles = 2 * 4 * (tm * Kp + tm * Hp + 2 * tm * tn)  # x, h_full, h_col, out (x2 bufs)
        weights = w_bufs * (wbytes * (Kp + Hp) * 3 * tn + 4 * 8 * tn)
        return tiles + weights

    # Gate-column tile: largest 128-multiple divisor of Hp whose footprint
    # fits ~60% of VMEM.
    n128 = Hp // 128
    tn = 128
    for m in range(1, n128 + 1):
        if n128 % m:
            continue
        cand = Hp // m
        if _vmem_needed(cand) <= int(0.6 * vmem_cap):
            tn = cand
            break
    n_col = Hp // tn

    def pad2(a, rows, cols):
        return jnp.pad(a, ((0, rows - a.shape[0]), (0, cols - a.shape[1])))

    def padrow(b):
        return jnp.pad(b, (0, Hp - b.shape[0]))

    # Per-gate weights, gate order (r, z, n); each gate padded so column
    # blocks are (8, 128)-aligned.
    W = jnp.stack([pad2(params["W_r"], Kp, Hp),
                   pad2(params["W_z"], Kp, Hp),
                   pad2(params["W_h"], Kp, Hp)], axis=0).astype(weight_dtype)
    U = jnp.stack([pad2(params["U_r"], Hp, Hp),
                   pad2(params["U_z"], Hp, Hp),
                   pad2(params["U_h"], Hp, Hp)], axis=0).astype(weight_dtype)

    # All biases in one sublane-aligned (8, Hp) f32 slab.
    zrow = jnp.zeros((Hp,), jnp.float32)
    Bias = jnp.stack(
        [padrow(params["b_r"]).astype(jnp.float32),
         padrow(params["b_z"]).astype(jnp.float32),
         padrow(params["b_ih"]).astype(jnp.float32),
         padrow(params["b_hh"]).astype(jnp.float32),
         zrow, zrow, zrow, zrow], axis=0)

    x_p = pad2(x, Bp, Kp).astype(jnp.float32)
    h_p = pad2(h_prev, Bp, Hp).astype(jnp.float32)

    grid = (Bp // tm, n_col)

    # Constant-index weight/bias blocks are single-buffered when fully
    # resident (n_col == 1); when streaming down the column axis keep the
    # default double-buffering so the weight DMA overlaps the MXU.
    def wspec(shape, imap):
        if n_col == 1:
            return pl.BlockSpec(shape, imap, pipeline_mode=pl.Buffered(1))
        return pl.BlockSpec(shape, imap)

    vmem_limit = int(min(int(0.75 * vmem_cap),
                         max(int(1.25 * _vmem_needed(tn)), 16 * 1024 * 1024)))

    out = pl.pallas_call(
        gru_cell_kernel,
        out_shape=jax.ShapeDtypeStruct((Bp, Hp), x.dtype),
        grid=grid,
        in_specs=[
            pl.BlockSpec((tm, Kp), lambda i, j: (i, 0)),        # x tile
            pl.BlockSpec((tm, Hp), lambda i, j: (i, 0)),        # h (full, U contraction)
            pl.BlockSpec((tm, tn), lambda i, j: (i, j)),        # h column chunk (blend)
            wspec((3, Kp, tn), lambda i, j: (0, 0, j)),          # W  (r,z,n)
            wspec((3, Hp, tn), lambda i, j: (0, 0, j)),          # U  (r,z,n)
            wspec((8, tn), lambda i, j: (0, j)),                 # biases
        ],
        out_specs=pl.BlockSpec((tm, tn), lambda i, j: (i, j)),
        compiler_params=pltpu.CompilerParams(
            dimension_semantics=("parallel", "parallel"),
            vmem_limit_bytes=vmem_limit,
        ),
    )(x_p, h_p, h_p, W, U, Bias)

    return out[:B, :H]


def init_params(key, input_size, hidden_size):
    ks = jax.random.split(key, 6)
    return {
        "W_z": jax.random.normal(ks[0], (input_size, hidden_size), jnp.float32) * 0.01,
        "U_z": jax.random.normal(ks[1], (hidden_size, hidden_size), jnp.float32) * 0.01,
        "b_z": jnp.zeros((hidden_size,), jnp.float32),
        "W_r": jax.random.normal(ks[2], (input_size, hidden_size), jnp.float32) * 0.01,
        "U_r": jax.random.normal(ks[3], (hidden_size, hidden_size), jnp.float32) * 0.01,
        "b_r": jnp.zeros((hidden_size,), jnp.float32),
        "W_h": jax.random.normal(ks[4], (input_size, hidden_size), jnp.float32) * 0.01,
        "U_h": jax.random.normal(ks[5], (hidden_size, hidden_size), jnp.float32) * 0.01,
        "b_ih": jnp.zeros((hidden_size,), jnp.float32),
        "b_hh": jnp.zeros((hidden_size,), jnp.float32),
    }


def gru_ref(x, h_prev, p):
    """Pure-JAX reference matching the PyTorch forward exactly."""
    r = jax.nn.sigmoid(x @ p["W_r"] + h_prev @ p["U_r"] + p["b_r"])
    z = jax.nn.sigmoid(x @ p["W_z"] + h_prev @ p["U_z"] + p["b_z"])
    h_tilde = jnp.tanh(x @ p["W_h"] + p["b_ih"] + r * (h_prev @ p["U_h"] + p["b_hh"]))
    return (1.0 - z) * h_tilde + z * h_prev


if __name__ == "__main__":
    key = jax.random.PRNGKey(0)
    k_param, k_x, k_h = jax.random.split(key, 3)

    batch = 2
    input_size = 16
    hidden_size = 32

    params = init_params(k_param, input_size, hidden_size)
    x = jax.random.normal(k_x, (batch, input_size), jnp.float32)
    h_prev = jax.random.normal(k_h, (batch, hidden_size), jnp.float32)

    h_expected = gru_ref(x, h_prev, params)

    # Full-precision path: must match the reference tightly.
    h_f32 = jax.block_until_ready(
        gru_cell(x, h_prev, params, weight_dtype=jnp.float32))
    assert h_f32.shape == (batch, hidden_size)
    assert jnp.allclose(h_f32, h_expected, atol=1e-5, rtol=1e-5), "f32 mismatch vs reference"

    # Default bf16-weight path (MXU fast path on v6e/v7x): f32 accumulate and
    # f32 gating, so only weight-quantization error remains.
    h_bf16 = jax.block_until_ready(gru_cell(x, h_prev, params))
    assert h_bf16.shape == (batch, hidden_size)
    assert jnp.allclose(h_bf16, h_expected, atol=2e-2, rtol=2e-2), "bf16 mismatch vs reference"

    print("KERNEL_OK")
</pallas_src>

<mosaic_0001>
module attributes {stable_mosaic.version = 11 : i64} {
  func.func @gru_cell_kernel(%arg0: i32, %arg1: i32, %arg2: memref<8x128xf32, #tpu.memory_space<vmem>>, %arg3: memref<8x128xf32, #tpu.memory_space<vmem>>, %arg4: memref<8x128xf32, #tpu.memory_space<vmem>>, %arg5: memref<3x128x128xf32, #tpu.memory_space<vmem>>, %arg6: memref<3x128x128xf32, #tpu.memory_space<vmem>>, %arg7: memref<8x128xf32, #tpu.memory_space<vmem>>, %arg8: memref<8x128xf32, #tpu.memory_space<vmem>>) attributes {dimension_semantics = [#tpu.dimension_semantics<parallel>, #tpu.dimension_semantics<parallel>], iteration_bounds = array<i64: 1, 1>, scalar_prefetch = 0 : i64, scratch_operands = 0 : i64, tpu.core_type = #tpu.core_type<tc>, window_params = [{transform_indices = @transform_0, window_bounds = array<i64: 8, 128>}, {transform_indices = @transform_1, window_bounds = array<i64: 8, 128>}, {transform_indices = @transform_2, window_bounds = array<i64: 8, 128>}, {pipeline_mode = #tpu.pipeline_mode<synchronous>, transform_indices = @transform_3, window_bounds = array<i64: 3, 128, 128>}, {pipeline_mode = #tpu.pipeline_mode<synchronous>, transform_indices = @transform_4, window_bounds = array<i64: 3, 128, 128>}, {pipeline_mode = #tpu.pipeline_mode<synchronous>, transform_indices = @transform_5, window_bounds = array<i64: 8, 128>}, {transform_indices = @transform_6, window_bounds = array<i64: 8, 128>}]} {
    %c0 = arith.constant 0 : index
    %c0_0 = arith.constant 0 : index
    %0 = vector.load %arg2[%c0, %c0_0] : memref<8x128xf32, #tpu.memory_space<vmem>>, vector<8x128xf32>
    %c0_1 = arith.constant 0 : index
    %c0_2 = arith.constant 0 : index
    %1 = vector.load %arg3[%c0_1, %c0_2] : memref<8x128xf32, #tpu.memory_space<vmem>>, vector<8x128xf32>
    %c0_3 = arith.constant 0 : index
    %c0_4 = arith.constant 0 : index
    %c0_5 = arith.constant 0 : index
    %2 = vector.load %arg5[%c0_3, %c0_4, %c0_5] : memref<3x128x128xf32, #tpu.memory_space<vmem>>, vector<1x128x128xf32>
    %3 = vector.shape_cast %2 : vector<1x128x128xf32> to vector<128x128xf32>
    %cst = arith.constant dense<0.000000e+00> : vector<8x128xf32>
    %4 = tpu.matmul %0, %3, %cst {dimension_numbers = #tpu.dot_dimension_numbers<[1], [0], [0], [1], [0, 0, 1, 1], [], []>} : vector<8x128xf32>, vector<128x128xf32>, vector<8x128xf32> -> vector<8x128xf32>
    %c0_6 = arith.constant 0 : index
    %c0_7 = arith.constant 0 : index
    %c0_8 = arith.constant 0 : index
    %5 = vector.load %arg6[%c0_6, %c0_7, %c0_8] : memref<3x128x128xf32, #tpu.memory_space<vmem>>, vector<1x128x128xf32>
    %6 = vector.shape_cast %5 : vector<1x128x128xf32> to vector<128x128xf32>
    %cst_9 = arith.constant dense<0.000000e+00> : vector<8x128xf32>
    %7 = tpu.matmul %1, %6, %cst_9 {dimension_numbers = #tpu.dot_dimension_numbers<[1], [0], [0], [1], [0, 0, 1, 1], [], []>} : vector<8x128xf32>, vector<128x128xf32>, vector<8x128xf32> -> vector<8x128xf32>
    %c0_10 = arith.constant 0 : index
    %c0_11 = arith.constant 0 : index
    %8 = vector.load %arg7[%c0_10, %c0_11] : memref<8x128xf32, #tpu.memory_space<vmem>>, vector<1x128xf32>
    %9 = vector.shape_cast %8 : vector<1x128xf32> to vector<128xf32>
    %10 = vector.shape_cast %9 : vector<128xf32> to vector<1x128xf32>
    %11 = vector.broadcast %10 : vector<1x128xf32> to vector<8x128xf32>
    %12 = arith.addf %4, %11 : vector<8x128xf32>
    %13 = arith.addf %12, %7 : vector<8x128xf32>
    %14 = arith.negf %13 : vector<8x128xf32>
    %15 = math.exp %14 : vector<8x128xf32>
    %cst_12 = arith.constant 1.000000e+00 : f32
    %16 = vector.broadcast %cst_12 : f32 to vector<8x128xf32>
    %17 = arith.addf %16, %15 : vector<8x128xf32>
    %18 = arith.divf %16, %17 : vector<8x128xf32>
    %c2 = arith.constant 2 : index
    %c0_13 = arith.constant 0 : index
    %c0_14 = arith.constant 0 : index
    %19 = vector.load %arg5[%c2, %c0_13, %c0_14] : memref<3x128x128xf32, #tpu.memory_space<vmem>>, vector<1x128x128xf32>
    %20 = vector.shape_cast %19 : vector<1x128x128xf32> to vector<128x128xf32>
    %cst_15 = arith.constant dense<0.000000e+00> : vector<8x128xf32>
    %21 = tpu.matmul %0, %20, %cst_15 {dimension_numbers = #tpu.dot_dimension_numbers<[1], [0], [0], [1], [0, 0, 1, 1], [], []>} : vector<8x128xf32>, vector<128x128xf32>, vector<8x128xf32> -> vector<8x128xf32>
    %c2_16 = arith.constant 2 : index
    %c0_17 = arith.constant 0 : index
    %c0_18 = arith.constant 0 : index
    %22 = vector.load %arg6[%c2_16, %c0_17, %c0_18] : memref<3x128x128xf32, #tpu.memory_space<vmem>>, vector<1x128x128xf32>
    %23 = vector.shape_cast %22 : vector<1x128x128xf32> to vector<128x128xf32>
    %cst_19 = arith.constant dense<0.000000e+00> : vector<8x128xf32>
    %24 = tpu.matmul %1, %23, %cst_19 {dimension_numbers = #tpu.dot_dimension_numbers<[1], [0], [0], [1], [0, 0, 1, 1], [], []>} : vector<8x128xf32>, vector<128x128xf32>, vector<8x128xf32> -> vector<8x128xf32>
    %c2_20 = arith.constant 2 : index
    %c0_21 = arith.constant 0 : index
    %25 = vector.load %arg7[%c2_20, %c0_21] : memref<8x128xf32, #tpu.memory_space<vmem>>, vector<1x128xf32>
    %26 = vector.shape_cast %25 : vector<1x128xf32> to vector<128xf32>
    %27 = vector.shape_cast %26 : vector<128xf32> to vector<1x128xf32>
    %28 = vector.broadcast %27 : vector<1x128xf32> to vector<8x128xf32>
    %29 = arith.addf %21, %28 : vector<8x128xf32>
    %c3 = arith.constant 3 : index
    %c0_22 = arith.constant 0 : index
    %30 = vector.load %arg7[%c3, %c0_22] : memref<8x128xf32, #tpu.memory_space<vmem>>, vector<1x128xf32>
    %31 = vector.shape_cast %30 : vector<1x128xf32> to vector<128xf32>
    %32 = vector.shape_cast %31 : vector<128xf32> to vector<1x128xf32>
    %33 = vector.broadcast %32 : vector<1x128xf32> to vector<8x128xf32>
    %34 = arith.addf %24, %33 : vector<8x128xf32>
    %35 = arith.mulf %18, %34 : vector<8x128xf32>
    %36 = arith.addf %29, %35 : vector<8x128xf32>
    %37 = math.tanh %36 : vector<8x128xf32>
    %c1 = arith.constant 1 : index
    %c0_23 = arith.constant 0 : index
    %c0_24 = arith.constant 0 : index
    %38 = vector.load %arg5[%c1, %c0_23, %c0_24] : memref<3x128x128xf32, #tpu.memory_space<vmem>>, vector<1x128x128xf32>
    %39 = vector.shape_cast %38 : vector<1x128x128xf32> to vector<128x128xf32>
    %cst_25 = arith.constant dense<0.000000e+00> : vector<8x128xf32>
    %40 = tpu.matmul %0, %39, %cst_25 {dimension_numbers = #tpu.dot_dimension_numbers<[1], [0], [0], [1], [0, 0, 1, 1], [], []>} : vector<8x128xf32>, vector<128x128xf32>, vector<8x128xf32> -> vector<8x128xf32>
    %c1_26 = arith.constant 1 : index
    %c0_27 = arith.constant 0 : index
    %c0_28 = arith.constant 0 : index
    %41 = vector.load %arg6[%c1_26, %c0_27, %c0_28] : memref<3x128x128xf32, #tpu.memory_space<vmem>>, vector<1x128x128xf32>
    %42 = vector.shape_cast %41 : vector<1x128x128xf32> to vector<128x128xf32>
    %cst_29 = arith.constant dense<0.000000e+00> : vector<8x128xf32>
    %43 = tpu.matmul %1, %42, %cst_29 {dimension_numbers = #tpu.dot_dimension_numbers<[1], [0], [0], [1], [0, 0, 1, 1], [], []>} : vector<8x128xf32>, vector<128x128xf32>, vector<8x128xf32> -> vector<8x128xf32>
    %c1_30 = arith.constant 1 : index
    %c0_31 = arith.constant 0 : index
    %44 = vector.load %arg7[%c1_30, %c0_31] : memref<8x128xf32, #tpu.memory_space<vmem>>, vector<1x128xf32>
    %45 = vector.shape_cast %44 : vector<1x128xf32> to vector<128xf32>
    %46 = vector.shape_cast %45 : vector<128xf32> to vector<1x128xf32>
    %47 = vector.broadcast %46 : vector<1x128xf32> to vector<8x128xf32>
    %48 = arith.addf %40, %47 : vector<8x128xf32>
    %49 = arith.addf %48, %43 : vector<8x128xf32>
    %50 = arith.negf %49 : vector<8x128xf32>
    %51 = math.exp %50 : vector<8x128xf32>
    %cst_32 = arith.constant 1.000000e+00 : f32
    %52 = vector.broadcast %cst_32 : f32 to vector<8x128xf32>
    %53 = arith.addf %52, %51 : vector<8x128xf32>
    %54 = arith.divf %52, %53 : vector<8x128xf32>
    %c0_33 = arith.constant 0 : index
    %c0_34 = arith.constant 0 : index
    %55 = vector.load %arg4[%c0_33, %c0_34] : memref<8x128xf32, #tpu.memory_space<vmem>>, vector<8x128xf32>
    %56 = arith.subf %55, %37 : vector<8x128xf32>
    %57 = arith.mulf %54, %56 : vector<8x128xf32>
    %58 = arith.addf %37, %57 : vector<8x128xf32>
    %c0_35 = arith.constant 0 : index
    %c0_36 = arith.constant 0 : index
    %59 = vector.load %arg8[%c0_35, %c0_36] : memref<8x128xf32, #tpu.memory_space<vmem>>, vector<8x128xf32>
    tpu.vector_store %arg8[%c0_35, %c0_36], %58 {strides = array<i32>} : memref<8x128xf32, #tpu.memory_space<vmem>>, vector<8x128xf32>,
    return
  }
  func.func @transform_0(%arg0: i32, %arg1: i32) -> (i32, i32) {
    %c0_i32 = arith.constant 0 : i32
    %c0_i32_0 = arith.constant 0 : i32
    return %arg0, %c0_i32 : i32, i32
  }
  func.func @transform_1(%arg0: i32, %arg1: i32) -> (i32, i32) {
    %c0_i32 = arith.constant 0 : i32
    %c0_i32_0 = arith.constant 0 : i32
    return %arg0, %c0_i32 : i32, i32
  }
  func.func @transform_2(%arg0: i32, %arg1: i32) -> (i32, i32) {
    %c0_i32 = arith.constant 0 : i32
    return %arg0, %arg1 : i32, i32
  }
  func.func @transform_3(%arg0: i32, %arg1: i32) -> (i32, i32, i32) {
    %c0_i32 = arith.constant 0 : i32
    %c0_i32_0 = arith.constant 0 : i32
    %c0_i32_1 = arith.constant 0 : i32
    return %c0_i32, %c0_i32_0, %arg1 : i32, i32, i32
  }
  func.func @transform_4(%arg0: i32, %arg1: i32) -> (i32, i32, i32) {
    %c0_i32 = arith.constant 0 : i32
    %c0_i32_0 = arith.constant 0 : i32
    %c0_i32_1 = arith.constant 0 : i32
    return %c0_i32, %c0_i32_0, %arg1 : i32, i32, i32
  }
  func.func @transform_5(%arg0: i32, %arg1: i32) -> (i32, i32) {
    %c0_i32 = arith.constant 0 : i32
    %c0_i32_0 = arith.constant 0 : i32
    return %c0_i32, %arg1 : i32, i32
  }
  func.func @transform_6(%arg0: i32, %arg1: i32) -> (i32, i32) {
    %c0_i32 = arith.constant 0 : i32
    return %arg0, %arg1 : i32, i32
  }
}

</mosaic_0001>

<llo_original>
// kernel: tpu_custom_call.1
$region0: #{tpu_custom_call.1}
  #allocation0 [shape = 'u32[]', space=smem, size = 0x4, offset = 0x4, fixed_abs, tag = 'smem constant byte address 0x4 - core index']
  #allocation1 [shape = 'u32[144,128]{1,0:T(1,128)}', space=vmem, size = 0x12000, scoped, tag = 'internal scratch']
  %s0 = inlined_call_operand.hbm [shape: f32[8,128], index: 0, kind: input, shape index: {}]
  %s1 = inlined_call_operand.hbm [shape: f32[8,128], index: 1, kind: input, shape index: {}]
  %s2 = inlined_call_operand.hbm [shape: f32[8,128], index: 2, kind: input, shape index: {}]
  %s3 = inlined_call_operand.hbm [shape: f32[3,128,128], index: 3, kind: input, shape index: {}]
  %s4 = inlined_call_operand.hbm [shape: f32[3,128,128], index: 4, kind: input, shape index: {}]
  %s5 = inlined_call_operand.vmem [shape: f32[8,128], index: 5, kind: input, shape index: {}]
  %s6 = inlined_call_operand.hbm [shape: f32[8,128], index: 6, kind: output, shape index: {}]
  %s7 = sld [smem:[#allocation0]]
  $region54: #{tpu_custom_call.1} parent=0
    _
  %s9 = ssub.s32 1, %s7
  %s10 = scalar_select 0, %s9, %s7
  $region1: #{tpu_custom_call.1} parent=0
    #allocation2 [shape = 'u8[4096]{0}', space=vmem, size = 0x1000, scoped, tag = 'input window, operand 0, single buffered']
    #allocation3 [shape = 's32[1]{0}', space=sflag, size = 0x4, scoped, tag = 'scoped memory for tpu_custom_call.1']
    #allocation4 [shape = 's32[1]{0}', space=sflag, size = 0x4, scoped, tag = 'scoped memory for tpu_custom_call.1']
    #allocation5 [shape = 'u8[4096]{0}', space=vmem, size = 0x1000, scoped, tag = 'input window, operand 1, single buffered']
    #allocation6 [shape = 's32[1]{0}', space=sflag, size = 0x4, scoped, tag = 'scoped memory for tpu_custom_call.1']
    #allocation7 [shape = 'u8[4096]{0}', space=vmem, size = 0x1000, scoped, tag = 'input window, operand 2, single buffered']
    #allocation8 [shape = 'u8[196608]{0}', space=vmem, size = 0x30000, scoped, tag = 'input window, operand 3, single buffered']
    #allocation9 [shape = 's32[1]{0}', space=sflag, size = 0x4, scoped, tag = 'scoped memory for tpu_custom_call.1']
    #allocation10 [shape = 'u8[196608]{0}', space=vmem, size = 0x30000, scoped, tag = 'input window, operand 4, single buffered']
    #allocation11 [shape = 'u8[4096]{0}', space=vmem, size = 0x1000, scoped, tag = 'output window, operand 0, single buffered']
    %11 = vsyncpa [#allocation3], 0
    %12 = vsyncpa [#allocation6], 0
    %13 = vsyncpa [#allocation9], 0
    %14 = vsyncpa [#allocation4], 0
    // Predicated region
    $region2: #{tpu_custom_call.1} parent=1 // pred_check
      _
    $region3: #{tpu_custom_call.1} parent=1 // pred_check_branch
      %16 = sbr.rel (0) target = $region5
    $region4: #{tpu_custom_call.1} parent=1 // pred_region
      %s18 = ssub.s32 128, 128
      %19 = vsyncadd [#allocation3], %s18
      %s21 = sshll.u32 [#allocation2], 4
      %s22 = int_to_ptr.vmem [resolvable:$true] %s21
      %24 = dma.hbm_to_vmem [thread:$0]  %s0, 128, %s22, [#allocation3]
    $region5: #{tpu_custom_call.1} parent=1 // pred_fallthru
      _
    // Predicated region
    $region6: #{tpu_custom_call.1} parent=1 // pred_check
      _
    $region7: #{tpu_custom_call.1} parent=1 // pred_check_branch
      %26 = sbr.rel (0) target = $region9
    $region8: #{tpu_custom_call.1} parent=1 // pred_region
      %s28 = ssub.s32 128, 128
      %29 = vsyncadd [#allocation6], %s28
      %s31 = sshll.u32 [#allocation5], 4
      %s32 = int_to_ptr.vmem [resolvable:$true] %s31
      %34 = dma.hbm_to_vmem [thread:$0]  %s1, 128, %s32, [#allocation6]
    $region9: #{tpu_custom_call.1} parent=1 // pred_fallthru
      _
    // Predicated region
    $region10: #{tpu_custom_call.1} parent=1 // pred_check
      _
    $region11: #{tpu_custom_call.1} parent=1 // pred_check_branch
      %36 = sbr.rel (0) target = $region13
    $region12: #{tpu_custom_call.1} parent=1 // pred_region
      %s38 = ssub.s32 128, 128
      %39 = vsyncadd [#allocation6], %s38
      %s41 = sshll.u32 [#allocation7], 4
      %s42 = int_to_ptr.vmem [resolvable:$true] %s41
      %44 = dma.hbm_to_vmem [thread:$0]  %s2, 128, %s42, [#allocation6]
    $region13: #{tpu_custom_call.1} parent=1 // pred_fallthru
      _
    // Predicated region
    $region14: #{tpu_custom_call.1} parent=1 // pred_check
      _
    $region15: #{tpu_custom_call.1} parent=1 // pred_check_branch
      %46 = sbr.rel (0) target = $region17
    $region16: #{tpu_custom_call.1} parent=1 // pred_region
      %s48 = ssub.s32 6144, 6144
      %49 = vsyncadd [#allocation9], %s48
      %s50 = sshll.u32 [#allocation8], 4
      %s51 = int_to_ptr.vmem [resolvable:$true] %s50
      %56 = dma.hbm_to_vmem [thread:$0]  %s3, 6144, %s51, [#allocation9], 128, 128, 8
    $region17: #{tpu_custom_call.1} parent=1 // pred_fallthru
      _
    // Predicated region
    $region18: #{tpu_custom_call.1} parent=1 // pred_check
      _
    $region19: #{tpu_custom_call.1} parent=1 // pred_check_branch
      %58 = sbr.rel (0) target = $region21
    $region20: #{tpu_custom_call.1} parent=1 // pred_region
      %s60 = ssub.s32 6144, 6144
      %61 = vsyncadd [#allocation9], %s60
      %s62 = sshll.u32 [#allocation10], 4
      %s63 = int_to_ptr.vmem [resolvable:$true] %s62
      %68 = dma.hbm_to_vmem [thread:$0]  %s4, 6144, %s63, [#allocation9], 128, 128, 8
    $region21: #{tpu_custom_call.1} parent=1 // pred_fallthru
      _
    // Predicated region
    $region22: #{tpu_custom_call.1} parent=1 // pred_check
      _
    $region23: #{tpu_custom_call.1} parent=1 // pred_check_branch
      %70 = sbr.rel (0) target = $region25
    $region24: #{tpu_custom_call.1} parent=1 // pred_region
      _
    $region25: #{tpu_custom_call.1} parent=1 // pred_fallthru
      _
    // Predicated region
    $region26: #{tpu_custom_call.1} parent=1 // pred_check
      _
    $region27: #{tpu_custom_call.1} parent=1 // pred_check_branch
      %72 = sbr.rel (0) target = $region29
    $region28: #{tpu_custom_call.1} parent=1 // pred_region
      %73 = dma.done [#allocation3], 128
    $region29: #{tpu_custom_call.1} parent=1 // pred_fallthru
      _
    // Predicated region
    $region30: #{tpu_custom_call.1} parent=1 // pred_check
      _
    $region31: #{tpu_custom_call.1} parent=1 // pred_check_branch
      %75 = sbr.rel (0) target = $region33
    $region32: #{tpu_custom_call.1} parent=1 // pred_region
      %76 = dma.done [#allocation6], 128
    $region33: #{tpu_custom_call.1} parent=1 // pred_fallthru
      _
    // Predicated region
    $region34: #{tpu_custom_call.1} parent=1 // pred_check
      _
    $region35: #{tpu_custom_call.1} parent=1 // pred_check_branch
      %78 = sbr.rel (0) target = $region37
    $region36: #{tpu_custom_call.1} parent=1 // pred_region
      %79 = dma.done [#allocation6], 128
    $region37: #{tpu_custom_call.1} parent=1 // pred_fallthru
      _
    // Predicated region
    $region38: #{tpu_custom_call.1} parent=1 // pred_check
      _
    $region39: #{tpu_custom_call.1} parent=1 // pred_check_branch
      %81 = sbr.rel (0) target = $region41
    $region40: #{tpu_custom_call.1} parent=1 // pred_region
      %82 = dma.done [#allocation9], 6144
    $region41: #{tpu_custom_call.1} parent=1 // pred_fallthru
      _
    // Predicated region
    $region42: #{tpu_custom_call.1} parent=1 // pred_check
      _
    $region43: #{tpu_custom_call.1} parent=1 // pred_check_branch
      %84 = sbr.rel (0) target = $region45
    $region44: #{tpu_custom_call.1} parent=1 // pred_region
      %85 = dma.done [#allocation9], 6144
    $region45: #{tpu_custom_call.1} parent=1 // pred_fallthru
      _
    %v86 = vld [vmem:[#allocation2] sm:$0xff]
    %v87 = vld [vmem:[#allocation5] sm:$0xff]
    %v88 = vld [vmem:[#allocation8] sm:$0xff]
    %v89 = vld [vmem:[#allocation8 + $0x8] sm:$0xff]
    %v90 = vld [vmem:[#allocation8 + $0x10] sm:$0xff]
    %v91 = vld [vmem:[#allocation8 + $0x18] sm:$0xff]
    %v92 = vld [vmem:[#allocation8 + $0x20] sm:$0xff]
    %v93 = vld [vmem:[#allocation8 + $0x28] sm:$0xff]
    %v94 = vld [vmem:[#allocation8 + $0x30] sm:$0xff]
    %v95 = vld [vmem:[#allocation8 + $0x38] sm:$0xff]
    %v96 = vld [vmem:[#allocation8 + $0x40] sm:$0xff]
    %v97 = vld [vmem:[#allocation8 + $0x48] sm:$0xff]
    %v98 = vld [vmem:[#allocation8 + $0x50] sm:$0xff]
    %v99 = vld [vmem:[#allocation8 + $0x58] sm:$0xff]
    %v100 = vld [vmem:[#allocation8 + $0x60] sm:$0xff]
    %v101 = vld [vmem:[#allocation8 + $0x68] sm:$0xff]
    %v102 = vld [vmem:[#allocation8 + $0x70] sm:$0xff]
    %v103 = vld [vmem:[#allocation8 + $0x78] sm:$0xff]
    %v104 = vld [vmem:[#allocation10] sm:$0xff]
    %v105 = vld [vmem:[#allocation10 + $0x8] sm:$0xff]
    %v106 = vld [vmem:[#allocation10 + $0x10] sm:$0xff]
    %v107 = vld [vmem:[#allocation10 + $0x18] sm:$0xff]
    %v108 = vld [vmem:[#allocation10 + $0x20] sm:$0xff]
    %v109 = vld [vmem:[#allocation10 + $0x28] sm:$0xff]
    %v110 = vld [vmem:[#allocation10 + $0x30] sm:$0xff]
    %v111 = vld [vmem:[#allocation10 + $0x38] sm:$0xff]
    %v112 = vld [vmem:[#allocation10 + $0x40] sm:$0xff]
    %v113 = vld [vmem:[#allocation10 + $0x48] sm:$0xff]
    %v114 = vld [vmem:[#allocation10 + $0x50] sm:$0xff]
    %v115 = vld [vmem:[#allocation10 + $0x58] sm:$0xff]
    %v116 = vld [vmem:[#allocation10 + $0x60] sm:$0xff]
    %v117 = vld [vmem:[#allocation10 + $0x68] sm:$0xff]
    %v118 = vld [vmem:[#allocation10 + $0x70] sm:$0xff]
    %v119 = vld [vmem:[#allocation10 + $0x78] sm:$0xff]
    %120 = vmatprep.subr.mxu0 0.0
    %121 = vmatpush1.msra.mxu0 %v104
    %122 = vmatprep.subr.mxu0 0.0
    %123 = vmatpush1.msra.mxu0 %v105
    %124 = vmatprep.subr.mxu0 0.0
    %125 = vmatpush1.msra.mxu0 %v106
    %126 = vmatprep.subr.mxu0 0.0
    %127 = vmatpush1.msra.mxu0 %v107
    %128 = vmatprep.subr.mxu0 0.0
    %129 = vmatpush1.msra.mxu0 %v108
    %130 = vmatprep.subr.mxu0 0.0
    %131 = vmatpush1.msra.mxu0 %v109
    %132 = vmatprep.subr.mxu0 0.0
    %133 = vmatpush1.msra.mxu0 %v110
    %134 = vmatprep.subr.mxu0 0.0
    %135 = vmatpush1.msra.mxu0 %v111
    %136 = vmatprep.subr.mxu0 0.0
    %137 = vmatpush1.msra.mxu0 %v112
    %138 = vmatprep.subr.mxu0 0.0
    %139 = vmatpush1.msra.mxu0 %v113
    %140 = vmatprep.subr.mxu0 0.0
    %141 = vmatpush1.msra.mxu0 %v114
    %142 = vmatprep.subr.mxu0 0.0
    %143 = vmatpush1.msra.mxu0 %v115
    %144 = vmatprep.subr.mxu0 0.0
    %145 = vmatpush1.msra.mxu0 %v116
    %146 = vmatprep.subr.mxu0 0.0
    %147 = vmatpush1.msra.mxu0 %v117
    %148 = vmatprep.subr.mxu0 0.0
    %149 = vmatpush1.msra.mxu0 %v118
    %150 = vmatprep.subr.mxu0 0.0
    %151 = vmatpush1.msra.mxu0 %v119
    %152 = vmatprep.subr.mxu0 0.0
    %153 = vmatpush1.msra.mxu0 0.0
    %154 = vmatprep.subr.mxu0 0.0
    %155 = vmatpush1.msra.mxu0 0.0
    %156 = vmatprep.subr.mxu0 0.0
    %157 = vmatpush1.msra.mxu0 0.0
    %158 = vmatprep.subr.mxu0 0.0
    %159 = vmatpush1.msra.mxu0 0.0
    %160 = vmatprep.subr.mxu0 0.0
    %161 = vmatpush1.msra.mxu0 0.0
    %162 = vmatprep.subr.mxu0 0.0
    %163 = vmatpush1.msra.mxu0 0.0
    %164 = vmatprep.subr.mxu0 0.0
    %165 = vmatpush1.msra.mxu0 0.0
    %166 = vmatprep.subr.mxu0 0.0
    %167 = vmatpush1.msra.mxu0 0.0
    %168 = vmatprep.subr.mxu0 0.0
    %169 = vmatpush1.msra.mxu0 0.0
    %170 = vmatprep.subr.mxu0 0.0
    %171 = vmatpush1.msra.mxu0 0.0
    %172 = vmatprep.subr.mxu0 0.0
    %173 = vmatpush1.msra.mxu0 0.0
    %174 = vmatprep.subr.mxu0 0.0
    %175 = vmatpush1.msra.mxu0 0.0
    %176 = vmatprep.subr.mxu0 0.0
    %177 = vmatpush1.msra.mxu0 0.0
    %178 = vmatprep.subr.mxu0 0.0
    %179 = vmatpush1.msra.mxu0 0.0
    %180 = vmatprep.subr.mxu0 0.0
    %181 = vmatpush1.msra.mxu0 0.0
    %182 = vmatprep.subr.mxu0 0.0
    %183 = vmatpush1.msra.mxu0 0.0
    %184 = vmatprep.mubr.f32.mxu0 0.0
    %185 = vmatmul.mubr.f32.gmra.mrb[0].mxu0 %v87
    %v186 = vpop.f32.mrb[0].mxu0
    %v187 = vadd.f32 0.0, %v186
    %v188 = vpop.f32.mrb[0].mxu0
    %189 = vdwg.mxu0
    %v190 = vld [vmem:[%s5] sm:$0x1]
    %v191 = vlaneseq
    %v192 = vshrl.u32 %v191, 7
    %v193 = vsub.s32 0, %v192
    %v194 = vrot.slane %v190, %v193
    %195 = vmatprep.subr.mxu0 0.0
    %196 = vmatpush1.msra.mxu0 %v88
    %197 = vmatprep.subr.mxu0 0.0
    %198 = vmatpush1.msra.mxu0 %v89
    %199 = vmatprep.subr.mxu0 0.0
    %200 = vmatpush1.msra.mxu0 %v90
    %201 = vmatprep.subr.mxu0 0.0
    %202 = vmatpush1.msra.mxu0 %v91
    %203 = vmatprep.subr.mxu0 0.0
    %204 = vmatpush1.msra.mxu0 %v92
    %205 = vmatprep.subr.mxu0 0.0
    %206 = vmatpush1.msra.mxu0 %v93
    %207 = vmatprep.subr.mxu0 0.0
    %208 = vmatpush1.msra.mxu0 %v94
    %209 = vmatprep.subr.mxu0 0.0
    %210 = vmatpush1.msra.mxu0 %v95
    %211 = vmatprep.subr.mxu0 0.0
    %212 = vmatpush1.msra.mxu0 %v96
    %213 = vmatprep.subr.mxu0 0.0
    %214 = vmatpush1.msra.mxu0 %v97
    %215 = vmatprep.subr.mxu0 0.0
    %216 = vmatpush1.msra.mxu0 %v98
    %217 = vmatprep.subr.mxu0 0.0
    %218 = vmatpush1.msra.mxu0 %v99
    %219 = vmatprep.subr.mxu0 0.0
    %220 = vmatpush1.msra.mxu0 %v100
    %221 = vmatprep.subr.mxu0 0.0
    %222 = vmatpush1.msra.mxu0 %v101
    %223 = vmatprep.subr.mxu0 0.0
    %224 = vmatpush1.msra.mxu0 %v102
    %225 = vmatprep.subr.mxu0 0.0
    %226 = vmatpush1.msra.mxu0 %v103
    %227 = vmatprep.subr.mxu0 0.0
    %228 = vmatpush1.msra.mxu0 0.0
    %229 = vmatprep.subr.mxu0 0.0
    %230 = vmatpush1.msra.mxu0 0.0
    %231 = vmatprep.subr.mxu0 0.0
    %232 = vmatpush1.msra.mxu0 0.0
    %233 = vmatprep.subr.mxu0 0.0
    %234 = vmatpush1.msra.mxu0 0.0
    %235 = vmatprep.subr.mxu0 0.0
    %236 = vmatpush1.msra.mxu0 0.0
    %237 = vmatprep.subr.mxu0 0.0
    %238 = vmatpush1.msra.mxu0 0.0
    %239 = vmatprep.subr.mxu0 0.0
    %240 = vmatpush1.msra.mxu0 0.0
    %241 = vmatprep.subr.mxu0 0.0
    %242 = vmatpush1.msra.mxu0 0.0
    %243 = vmatprep.subr.mxu0 0.0
    %244 = vmatpush1.msra.mxu0 0.0
    %245 = vmatprep.subr.mxu0 0.0
    %246 = vmatpush1.msra.mxu0 0.0
    %247 = vmatprep.subr.mxu0 0.0
    %248 = vmatpush1.msra.mxu0 0.0
    %249 = vmatprep.subr.mxu0 0.0
    %250 = vmatpush1.msra.mxu0 0.0
    %251 = vmatprep.subr.mxu0 0.0
    %252 = vmatpush1.msra.mxu0 0.0
    %253 = vmatprep.subr.mxu0 0.0
    %254 = vmatpush1.msra.mxu0 0.0
    %255 = vmatprep.subr.mxu0 0.0
    %256 = vmatpush1.msra.mxu0 0.0
    %257 = vmatprep.subr.mxu0 0.0
    %258 = vmatpush1.msra.mxu0 0.0
    %259 = vmatprep.mubr.f32.mxu0 0.0
    %260 = vmatmul.mubr.f32.gmra.mrb[0].mxu0 %v86
    %v261 = vpop.f32.mrb[0].mxu0
    %v262 = vadd.f32 %v194, %v261
    %v263 = vpop.f32.mrb[0].mxu0
    %264 = vdwg.mxu0
    %v265 = vadd.f32 %v262, %v187
    %v266 = vxor.u32 %v265, 2147483648
    %v267 = vmul.f32 %v266, 1.442695
    %v268 = vpow.pop %v267
    %v269 = vadd.f32 %v268, 1.0
    %v270 = vrcp.pop %v269
    %v271 = vmul.f32 1.0, %v270
    %s272 = scalar_lea.vmem [#allocation8], 256
    %v273 = vld [vmem:[%s272] sm:$0xff]
    %v274 = vld [vmem:[%s272 + $0x8] sm:$0xff]
    %v275 = vld [vmem:[%s272 + $0x10] sm:$0xff]
    %v276 = vld [vmem:[%s272 + $0x18] sm:$0xff]
    %v277 = vld [vmem:[%s272 + $0x20] sm:$0xff]
    %v278 = vld [vmem:[%s272 + $0x28] sm:$0xff]
    %v279 = vld [vmem:[%s272 + $0x30] sm:$0xff]
    %v280 = vld [vmem:[%s272 + $0x38] sm:$0xff]
    %v281 = vld [vmem:[%s272 + $0x40] sm:$0xff]
    %v282 = vld [vmem:[%s272 + $0x48] sm:$0xff]
    %v283 = vld [vmem:[%s272 + $0x50] sm:$0xff]
    %v284 = vld [vmem:[%s272 + $0x58] sm:$0xff]
    %v285 = vld [vmem:[%s272 + $0x60] sm:$0xff]
    %v286 = vld [vmem:[%s272 + $0x68] sm:$0xff]
    %v287 = vld [vmem:[%s272 + $0x70] sm:$0xff]
    %v288 = vld [vmem:[%s272 + $0x78] sm:$0xff]
    %s289 = scalar_lea.vmem [#allocation10], 256
    %v290 = vld [vmem:[%s289] sm:$0xff]
    %v291 = vld [vmem:[%s289 + $0x8] sm:$0xff]
    %v292 = vld [vmem:[%s289 + $0x10] sm:$0xff]
    %v293 = vld [vmem:[%s289 + $0x18] sm:$0xff]
    %v294 = vld [vmem:[%s289 + $0x20] sm:$0xff]
    %v295 = vld [vmem:[%s289 + $0x28] sm:$0xff]
    %v296 = vld [vmem:[%s289 + $0x30] sm:$0xff]
    %v297 = vld [vmem:[%s289 + $0x38] sm:$0xff]
    %v298 = vld [vmem:[%s289 + $0x40] sm:$0xff]
    %v299 = vld [vmem:[%s289 + $0x48] sm:$0xff]
    %v300 = vld [vmem:[%s289 + $0x50] sm:$0xff]
    %v301 = vld [vmem:[%s289 + $0x58] sm:$0xff]
    %v302 = vld [vmem:[%s289 + $0x60] sm:$0xff]
    %v303 = vld [vmem:[%s289 + $0x68] sm:$0xff]
    %v304 = vld [vmem:[%s289 + $0x70] sm:$0xff]
    %v305 = vld [vmem:[%s289 + $0x78] sm:$0xff]
    %v306 = vld [vmem:[%s5 + $0x2] sm:$0x1]
    %v307 = vlaneseq
    %v308 = vshrl.u32 %v307, 7
    %v309 = vsub.s32 0, %v308
    %v310 = vrot.slane %v306, %v309
    %311 = vmatprep.subr.mxu0 0.0
    %312 = vmatpush1.msra.mxu0 %v273
    %313 = vmatprep.subr.mxu0 0.0
    %314 = vmatpush1.msra.mxu0 %v274
    %315 = vmatprep.subr.mxu0 0.0
    %316 = vmatpush1.msra.mxu0 %v275
    %317 = vmatprep.subr.mxu0 0.0
    %318 = vmatpush1.msra.mxu0 %v276
    %319 = vmatprep.subr.mxu0 0.0
    %320 = vmatpush1.msra.mxu0 %v277
    %321 = vmatprep.subr.mxu0 0.0
    %322 = vmatpush1.msra.mxu0 %v278
    %323 = vmatprep.subr.mxu0 0.0
    %324 = vmatpush1.msra.mxu0 %v279
    %325 = vmatprep.subr.mxu0 0.0
    %326 = vmatpush1.msra.mxu0 %v280
    %327 = vmatprep.subr.mxu0 0.0
    %328 = vmatpush1.msra.mxu0 %v281
    %329 = vmatprep.subr.mxu0 0.0
    %330 = vmatpush1.msra.mxu0 %v282
    %331 = vmatprep.subr.mxu0 0.0
    %332 = vmatpush1.msra.mxu0 %v283
    %333 = vmatprep.subr.mxu0 0.0
    %334 = vmatpush1.msra.mxu0 %v284
    %335 = vmatprep.subr.mxu0 0.0
    %336 = vmatpush1.msra.mxu0 %v285
    %337 = vmatprep.subr.mxu0 0.0
    %338 = vmatpush1.msra.mxu0 %v286
    %339 = vmatprep.subr.mxu0 0.0
    %340 = vmatpush1.msra.mxu0 %v287
    %341 = vmatprep.subr.mxu0 0.0
    %342 = vmatpush1.msra.mxu0 %v288
    %343 = vmatprep.subr.mxu0 0.0
    %344 = vmatpush1.msra.mxu0 0.0
    %345 = vmatprep.subr.mxu0 0.0
    %346 = vmatpush1.msra.mxu0 0.0
    %347 = vmatprep.subr.mxu0 0.0
    %348 = vmatpush1.msra.mxu0 0.0
    %349 = vmatprep.subr.mxu0 0.0
    %350 = vmatpush1.msra.mxu0 0.0
    %351 = vmatprep.subr.mxu0 0.0
    %352 = vmatpush1.msra.mxu0 0.0
    %353 = vmatprep.subr.mxu0 0.0
    %354 = vmatpush1.msra.mxu0 0.0
    %355 = vmatprep.subr.mxu0 0.0
    %356 = vmatpush1.msra.mxu0 0.0
    %357 = vmatprep.subr.mxu0 0.0
    %358 = vmatpush1.msra.mxu0 0.0
    %359 = vmatprep.subr.mxu0 0.0
    %360 = vmatpush1.msra.mxu0 0.0
    %361 = vmatprep.subr.mxu0 0.0
    %362 = vmatpush1.msra.mxu0 0.0
    %363 = vmatprep.subr.mxu0 0.0
    %364 = vmatpush1.msra.mxu0 0.0
    %365 = vmatprep.subr.mxu0 0.0
    %366 = vmatpush1.msra.mxu0 0.0
    %367 = vmatprep.subr.mxu0 0.0
    %368 = vmatpush1.msra.mxu0 0.0
    %369 = vmatprep.subr.mxu0 0.0
    %370 = vmatpush1.msra.mxu0 0.0
    %371 = vmatprep.subr.mxu0 0.0
    %372 = vmatpush1.msra.mxu0 0.0
    %373 = vmatprep.subr.mxu0 0.0
    %374 = vmatpush1.msra.mxu0 0.0
    %375 = vmatprep.mubr.f32.mxu0 0.0
    %376 = vmatmul.mubr.f32.gmra.mrb[0].mxu0 %v86
    %v377 = vpop.f32.mrb[0].mxu0
    %v378 = vadd.f32 %v310, %v377
    %v379 = vpop.f32.mrb[0].mxu0
    %380 = vdwg.mxu0
    %v381 = vld [vmem:[%s5 + $0x3] sm:$0x1]
    %v382 = vlaneseq
    %v383 = vshrl.u32 %v382, 7
    %v384 = vsub.s32 0, %v383
    %v385 = vrot.slane %v381, %v384
    %386 = vmatprep.subr.mxu0 0.0
    %387 = vmatpush1.msra.mxu0 %v290
    %388 = vmatprep.subr.mxu0 0.0
    %389 = vmatpush1.msra.mxu0 %v291
    %390 = vmatprep.subr.mxu0 0.0
    %391 = vmatpush1.msra.mxu0 %v292
    %392 = vmatprep.subr.mxu0 0.0
    %393 = vmatpush1.msra.mxu0 %v293
    %394 = vmatprep.subr.mxu0 0.0
    %395 = vmatpush1.msra.mxu0 %v294
    %396 = vmatprep.subr.mxu0 0.0
    %397 = vmatpush1.msra.mxu0 %v295
    %398 = vmatprep.subr.mxu0 0.0
    %399 = vmatpush1.msra.mxu0 %v296
    %400 = vmatprep.subr.mxu0 0.0
    %401 = vmatpush1.msra.mxu0 %v297
    %402 = vmatprep.subr.mxu0 0.0
    %403 = vmatpush1.msra.mxu0 %v298
    %404 = vmatprep.subr.mxu0 0.0
    %405 = vmatpush1.msra.mxu0 %v299
    %406 = vmatprep.subr.mxu0 0.0
    %407 = vmatpush1.msra.mxu0 %v300
    %408 = vmatprep.subr.mxu0 0.0
    %409 = vmatpush1.msra.mxu0 %v301
    %410 = vmatprep.subr.mxu0 0.0
    %411 = vmatpush1.msra.mxu0 %v302
    %412 = vmatprep.subr.mxu0 0.0
    %413 = vmatpush1.msra.mxu0 %v303
    %414 = vmatprep.subr.mxu0 0.0
    %415 = vmatpush1.msra.mxu0 %v304
    %416 = vmatprep.subr.mxu0 0.0
    %417 = vmatpush1.msra.mxu0 %v305
    %418 = vmatprep.subr.mxu0 0.0
    %419 = vmatpush1.msra.mxu0 0.0
    %420 = vmatprep.subr.mxu0 0.0
    %421 = vmatpush1.msra.mxu0 0.0
    %422 = vmatprep.subr.mxu0 0.0
    %423 = vmatpush1.msra.mxu0 0.0
    %424 = vmatprep.subr.mxu0 0.0
    %425 = vmatpush1.msra.mxu0 0.0
    %426 = vmatprep.subr.mxu0 0.0
    %427 = vmatpush1.msra.mxu0 0.0
    %428 = vmatprep.subr.mxu0 0.0
    %429 = vmatpush1.msra.mxu0 0.0
    %430 = vmatprep.subr.mxu0 0.0
    %431 = vmatpush1.msra.mxu0 0.0
    %432 = vmatprep.subr.mxu0 0.0
    %433 = vmatpush1.msra.mxu0 0.0
    %434 = vmatprep.subr.mxu0 0.0
    %435 = vmatpush1.msra.mxu0 0.0
    %436 = vmatprep.subr.mxu0 0.0
    %437 = vmatpush1.msra.mxu0 0.0
    %438 = vmatprep.subr.mxu0 0.0
    %439 = vmatpush1.msra.mxu0 0.0
    %440 = vmatprep.subr.mxu0 0.0
    %441 = vmatpush1.msra.mxu0 0.0
    %442 = vmatprep.subr.mxu0 0.0
    %443 = vmatpush1.msra.mxu0 0.0
    %444 = vmatprep.subr.mxu0 0.0
    %445 = vmatpush1.msra.mxu0 0.0
    %446 = vmatprep.subr.mxu0 0.0
    %447 = vmatpush1.msra.mxu0 0.0
    %448 = vmatprep.subr.mxu0 0.0
    %449 = vmatpush1.msra.mxu0 0.0
    %450 = vmatprep.mubr.f32.mxu0 0.0
    %451 = vmatmul.mubr.f32.gmra.mrb[0].mxu0 %v87
    %v452 = vpop.f32.mrb[0].mxu0
    %v453 = vadd.f32 %v385, %v452
    %v454 = vpop.f32.mrb[0].mxu0
    %455 = vdwg.mxu0
    %v456 = vmul.f32 %v271, %v453
    %v457 = vadd.f32 %v378, %v456
    %v458 = vtanh.pop %v457
    %s459 = scalar_lea.vmem [#allocation8], 128
    %v460 = vld [vmem:[%s459] sm:$0xff]
    %v461 = vld [vmem:[%s459 + $0x8] sm:$0xff]
    %v462 = vld [vmem:[%s459 + $0x10] sm:$0xff]
    %v463 = vld [vmem:[%s459 + $0x18] sm:$0xff]
    %v464 = vld [vmem:[%s459 + $0x20] sm:$0xff]
    %v465 = vld [vmem:[%s459 + $0x28] sm:$0xff]
    %v466 = vld [vmem:[%s459 + $0x30] sm:$0xff]
    %v467 = vld [vmem:[%s459 + $0x38] sm:$0xff]
    %v468 = vld [vmem:[%s459 + $0x40] sm:$0xff]
    %v469 = vld [vmem:[%s459 + $0x48] sm:$0xff]
    %v470 = vld [vmem:[%s459 + $0x50] sm:$0xff]
    %v471 = vld [vmem:[%s459 + $0x58] sm:$0xff]
    %v472 = vld [vmem:[%s459 + $0x60] sm:$0xff]
    %v473 = vld [vmem:[%s459 + $0x68] sm:$0xff]
    %v474 = vld [vmem:[%s459 + $0x70] sm:$0xff]
    %v475 = vld [vmem:[%s459 + $0x78] sm:$0xff]
    %s476 = scalar_lea.vmem [#allocation10], 128
    %v477 = vld [vmem:[%s476] sm:$0xff]
    %v478 = vld [vmem:[%s476 + $0x8] sm:$0xff]
    %v479 = vld [vmem:[%s476 + $0x10] sm:$0xff]
    %v480 = vld [vmem:[%s476 + $0x18] sm:$0xff]
    %v481 = vld [vmem:[%s476 + $0x20] sm:$0xff]
    %v482 = vld [vmem:[%s476 + $0x28] sm:$0xff]
    %v483 = vld [vmem:[%s476 + $0x30] sm:$0xff]
    %v484 = vld [vmem:[%s476 + $0x38] sm:$0xff]
    %v485 = vld [vmem:[%s476 + $0x40] sm:$0xff]
    %v486 = vld [vmem:[%s476 + $0x48] sm:$0xff]
    %v487 = vld [vmem:[%s476 + $0x50] sm:$0xff]
    %v488 = vld [vmem:[%s476 + $0x58] sm:$0xff]
    %v489 = vld [vmem:[%s476 + $0x60] sm:$0xff]
    %v490 = vld [vmem:[%s476 + $0x68] sm:$0xff]
    %v491 = vld [vmem:[%s476 + $0x70] sm:$0xff]
    %v492 = vld [vmem:[%s476 + $0x78] sm:$0xff]
    %493 = vmatprep.subr.mxu0 0.0
    %494 = vmatpush1.msra.mxu0 %v477
    %495 = vmatprep.subr.mxu0 0.0
    %496 = vmatpush1.msra.mxu0 %v478
    %497 = vmatprep.subr.mxu0 0.0
    %498 = vmatpush1.msra.mxu0 %v479
    %499 = vmatprep.subr.mxu0 0.0
    %500 = vmatpush1.msra.mxu0 %v480
    %501 = vmatprep.subr.mxu0 0.0
    %502 = vmatpush1.msra.mxu0 %v481
    %503 = vmatprep.subr.mxu0 0.0
    %504 = vmatpush1.msra.mxu0 %v482
    %505 = vmatprep.subr.mxu0 0.0
    %506 = vmatpush1.msra.mxu0 %v483
    %507 = vmatprep.subr.mxu0 0.0
    %508 = vmatpush1.msra.mxu0 %v484
    %509 = vmatprep.subr.mxu0 0.0
    %510 = vmatpush1.msra.mxu0 %v485
    %511 = vmatprep.subr.mxu0 0.0
    %512 = vmatpush1.msra.mxu0 %v486
    %513 = vmatprep.subr.mxu0 0.0
    %514 = vmatpush1.msra.mxu0 %v487
    %515 = vmatprep.subr.mxu0 0.0
    %516 = vmatpush1.msra.mxu0 %v488
    %517 = vmatprep.subr.mxu0 0.0
    %518 = vmatpush1.msra.mxu0 %v489
    %519 = vmatprep.subr.mxu0 0.0
    %520 = vmatpush1.msra.mxu0 %v490
    %521 = vmatprep.subr.mxu0 0.0
    %522 = vmatpush1.msra.mxu0 %v491
    %523 = vmatprep.subr.mxu0 0.0
    %524 = vmatpush1.msra.mxu0 %v492
    %525 = vmatprep.subr.mxu0 0.0
    %526 = vmatpush1.msra.mxu0 0.0
    %527 = vmatprep.subr.mxu0 0.0
    %528 = vmatpush1.msra.mxu0 0.0
    %529 = vmatprep.subr.mxu0 0.0
    %530 = vmatpush1.msra.mxu0 0.0
    %531 = vmatprep.subr.mxu0 0.0
    %532 = vmatpush1.msra.mxu0 0.0
    %533 = vmatprep.subr.mxu0 0.0
    %534 = vmatpush1.msra.mxu0 0.0
    %535 = vmatprep.subr.mxu0 0.0
    %536 = vmatpush1.msra.mxu0 0.0
    %537 = vmatprep.subr.mxu0 0.0
    %538 = vmatpush1.msra.mxu0 0.0
    %539 = vmatprep.subr.mxu0 0.0
    %540 = vmatpush1.msra.mxu0 0.0
    %541 = vmatprep.subr.mxu0 0.0
    %542 = vmatpush1.msra.mxu0 0.0
    %543 = vmatprep.subr.mxu0 0.0
    %544 = vmatpush1.msra.mxu0 0.0
    %545 = vmatprep.subr.mxu0 0.0
    %546 = vmatpush1.msra.mxu0 0.0
    %547 = vmatprep.subr.mxu0 0.0
    %548 = vmatpush1.msra.mxu0 0.0
    %549 = vmatprep.subr.mxu0 0.0
    %550 = vmatpush1.msra.mxu0 0.0
    %551 = vmatprep.subr.mxu0 0.0
    %552 = vmatpush1.msra.mxu0 0.0
    %553 = vmatprep.subr.mxu0 0.0
    %554 = vmatpush1.msra.mxu0 0.0
    %555 = vmatprep.subr.mxu0 0.0
    %556 = vmatpush1.msra.mxu0 0.0
    %557 = vmatprep.mubr.f32.mxu0 0.0
    %558 = vmatmul.mubr.f32.gmra.mrb[0].mxu0 %v87
    %v559 = vpop.f32.mrb[0].mxu0
    %v560 = vadd.f32 0.0, %v559
    %v561 = vpop.f32.mrb[0].mxu0
    %562 = vdwg.mxu0
    %v563 = vld [vmem:[%s5 + $0x1] sm:$0x1]
    %v564 = vlaneseq
    %v565 = vshrl.u32 %v564, 7
    %v566 = vsub.s32 0, %v565
    %v567 = vrot.slane %v563, %v566
    %568 = vmatprep.subr.mxu0 0.0
    %569 = vmatpush1.msra.mxu0 %v460
    %570 = vmatprep.subr.mxu0 0.0
    %571 = vmatpush1.msra.mxu0 %v461
    %572 = vmatprep.subr.mxu0 0.0
    %573 = vmatpush1.msra.mxu0 %v462
    %574 = vmatprep.subr.mxu0 0.0
    %575 = vmatpush1.msra.mxu0 %v463
    %576 = vmatprep.subr.mxu0 0.0
    %577 = vmatpush1.msra.mxu0 %v464
    %578 = vmatprep.subr.mxu0 0.0
    %579 = vmatpush1.msra.mxu0 %v465
    %580 = vmatprep.subr.mxu0 0.0
    %581 = vmatpush1.msra.mxu0 %v466
    %582 = vmatprep.subr.mxu0 0.0
    %583 = vmatpush1.msra.mxu0 %v467
    %584 = vmatprep.subr.mxu0 0.0
    %585 = vmatpush1.msra.mxu0 %v468
    %586 = vmatprep.subr.mxu0 0.0
    %587 = vmatpush1.msra.mxu0 %v469
    %588 = vmatprep.subr.mxu0 0.0
    %589 = vmatpush1.msra.mxu0 %v470
    %590 = vmatprep.subr.mxu0 0.0
    %591 = vmatpush1.msra.mxu0 %v471
    %592 = vmatprep.subr.mxu0 0.0
    %593 = vmatpush1.msra.mxu0 %v472
    %594 = vmatprep.subr.mxu0 0.0
    %595 = vmatpush1.msra.mxu0 %v473
    %596 = vmatprep.subr.mxu0 0.0
    %597 = vmatpush1.msra.mxu0 %v474
    %598 = vmatprep.subr.mxu0 0.0
    %599 = vmatpush1.msra.mxu0 %v475
    %600 = vmatprep.subr.mxu0 0.0
    %601 = vmatpush1.msra.mxu0 0.0
    %602 = vmatprep.subr.mxu0 0.0
    %603 = vmatpush1.msra.mxu0 0.0
    %604 = vmatprep.subr.mxu0 0.0
    %605 = vmatpush1.msra.mxu0 0.0
    %606 = vmatprep.subr.mxu0 0.0
    %607 = vmatpush1.msra.mxu0 0.0
    %608 = vmatprep.subr.mxu0 0.0
    %609 = vmatpush1.msra.mxu0 0.0
    %610 = vmatprep.subr.mxu0 0.0
    %611 = vmatpush1.msra.mxu0 0.0
    %612 = vmatprep.subr.mxu0 0.0
    %613 = vmatpush1.msra.mxu0 0.0
    %614 = vmatprep.subr.mxu0 0.0
    %615 = vmatpush1.msra.mxu0 0.0
    %616 = vmatprep.subr.mxu0 0.0
    %617 = vmatpush1.msra.mxu0 0.0
    %618 = vmatprep.subr.mxu0 0.0
    %619 = vmatpush1.msra.mxu0 0.0
    %620 = vmatprep.subr.mxu0 0.0
    %621 = vmatpush1.msra.mxu0 0.0
    %622 = vmatprep.subr.mxu0 0.0
    %623 = vmatpush1.msra.mxu0 0.0
    %624 = vmatprep.subr.mxu0 0.0
    %625 = vmatpush1.msra.mxu0 0.0
    %626 = vmatprep.subr.mxu0 0.0
    %627 = vmatpush1.msra.mxu0 0.0
    %628 = vmatprep.subr.mxu0 0.0
    %629 = vmatpush1.msra.mxu0 0.0
    %630 = vmatprep.subr.mxu0 0.0
    %631 = vmatpush1.msra.mxu0 0.0
    %632 = vmatprep.mubr.f32.mxu0 0.0
    %633 = vmatmul.mubr.f32.gmra.mrb[0].mxu0 %v86
    %v634 = vpop.f32.mrb[0].mxu0
    %v635 = vadd.f32 %v567, %v634
    %v636 = vpop.f32.mrb[0].mxu0
    %637 = vdwg.mxu0
    %v638 = vadd.f32 %v635, %v560
    %v639 = vxor.u32 %v638, 2147483648
    %v640 = vmul.f32 %v639, 1.442695
    %v641 = vpow.pop %v640
    %v642 = vadd.f32 %v641, 1.0
    %v643 = vrcp.pop %v642
    %v644 = vmul.f32 1.0, %v643
    %v645 = vld [vmem:[#allocation7] sm:$0xff]
    %v646 = vsub.f32 %v645, %v458
    %v647 = vmul.f32 %v644, %v646
    %v648 = vadd.f32 %v458, %v647
    %649 = vst [vmem:[#allocation11] sm:$0xff] %v648
    // Predicated region
    $region46: #{tpu_custom_call.1} parent=1 // pred_check
      _
    $region47: #{tpu_custom_call.1} parent=1 // pred_check_branch
      %651 = sbr.rel (0) target = $region49
    $region48: #{tpu_custom_call.1} parent=1 // pred_region
      %s653 = ssub.s32 128, 128
      %654 = vsyncadd [#allocation4], %s653
      %s656 = sshll.u32 [#allocation11], 4
      %s657 = int_to_ptr.vmem [resolvable:$true] %s656
      %659 = dma.vmem_to_hbm [thread:$0]  %s657, 128, %s6, [#allocation4]
    $region49: #{tpu_custom_call.1} parent=1 // pred_fallthru
      _
    // Predicated region
    $region50: #{tpu_custom_call.1} parent=1 // pred_check
      _
    $region51: #{tpu_custom_call.1} parent=1 // pred_check_branch
      %661 = sbr.rel (0) target = $region53
    $region52: #{tpu_custom_call.1} parent=1 // pred_region
      %662 = dma.done [#allocation4], 128
    $region53: #{tpu_custom_call.1} parent=1 // pred_fallthru
      _
    %663 = vsyncpa [#allocation3], 1
    %664 = vsyncpa [#allocation6], 1
    %665 = vsyncpa [#allocation9], 1
    %666 = vsyncpa [#allocation4], 1

</llo_original>
